<compile_context>
chip_gen: v7x
topology: tpu7x:2x2x1
jax: 0.10.0
libtpu: 0.0.40
codegen_flags: <defaults>
</compile_context>

<pallas_src>
import functools

import jax
import jax.numpy as jnp
from jax import lax
from jax.experimental import pallas as pl
from jax.experimental.pallas import tpu as pltpu

LANES = 128
TARGET_BLOCK_BYTES = 2 * 1024 * 1024   # ~2 MiB HBM block per grid step
MAX_ACC_ROWS = 64                      # widened resident accumulator (ILP)
VMEM_LIMIT_BYTES = 32 * 1024 * 1024    # raise v5e scoped default (16 MiB)


def _round_up(x, m):
    return ((x + m - 1) // m) * m


def _num_chunks():
    """2 parallel chunks only on chips with 2 TensorCores (v7x / megacore)."""
    try:
        kind = jax.devices()[0].device_kind.lower()
    except Exception:
        return 2
    single_tc = ("lite" in kind) or ("v5e" in kind) or ("v6e" in kind)
    return 1 if single_tc else 2


def _partial_sum_kernel(x_ref, o_ref, *, row_tile, acc_rows, tiles_per_chunk,
                        total_tiles, valid_rows, has_overrun):
    c = pl.program_id(0)          # parallel chunk (one per TensorCore on v7x)
    i = pl.program_id(1)          # sequential row-tile within the chunk

    @pl.when(i == 0)
    def _():
        o_ref[...] = jnp.zeros_like(o_ref)

    blk = c * tiles_per_chunk + i   # unclamped logical tile index

    def accumulate(tile_f32):
        # Vreg-wise VPU accumulation into the resident (acc_rows, 128) block;
        # the single cross-lane/sublane reduce happens on the tiny output in
        # the wrapper.
        o_ref[...] += tile_f32.reshape(
            row_tile // acc_rows, acc_rows, LANES).sum(axis=0)

    def hot():
        accumulate(x_ref[...].astype(jnp.float32))

    last_tile_full = (valid_rows % row_tile) == 0   # static Python bool

    if last_tile_full:
        # Every real tile is fully valid: no masking work at all on any tile.
        if has_overrun:
            pl.when(blk < total_tiles)(hot)   # skip clamped overrun blocks
        else:
            hot()
    else:
        # Hot path: interior tiles, bare cast + accumulate only.
        pl.when(blk < total_tiles - 1)(hot)

        # Cold path: the single boundary tile.  Pallas' boundary-block read
        # brings undefined VMEM contents into rows >= valid_rows, so mask with
        # a select (not a multiply -- garbage rows may hold NaN/Inf).
        @pl.when(blk == total_tiles - 1)
        def _():
            valid_in_last = valid_rows - (total_tiles - 1) * row_tile
            row_ids = lax.broadcasted_iota(jnp.int32, (row_tile, LANES), 0)
            tile = jnp.where(row_ids < valid_in_last,
                             x_ref[...].astype(jnp.float32), 0.0)
            accumulate(tile)
        # Overrun blocks (blk >= total_tiles) match neither branch -> skipped.


def _partial_sums(x2d, *, row_tile, acc_rows, num_chunks):
    rows, _ = x2d.shape
    total_tiles = pl.cdiv(rows, row_tile)
    tiles_per_chunk = pl.cdiv(total_tiles, num_chunks)
    has_overrun = (tiles_per_chunk * num_chunks) != total_tiles

    kernel = functools.partial(
        _partial_sum_kernel,
        row_tile=row_tile,
        acc_rows=acc_rows,
        tiles_per_chunk=tiles_per_chunk,
        total_tiles=total_tiles,
        valid_rows=rows,
        has_overrun=has_overrun,
    )

    def in_index_map(c, i):
        # Clamp overrun blocks of the last chunk (they are skipped in-kernel).
        return (jnp.minimum(c * tiles_per_chunk + i, total_tiles - 1), 0)

    in_kwargs = {}
    if tiles_per_chunk >= 3:
        # A streaming reduce has little compute to hide DMA behind; a third
        # buffer smooths HBM latency jitter for a few extra MiB of VMEM.
        in_kwargs["pipeline_mode"] = pl.Buffered(3)

    itemsize = jnp.dtype(x2d.dtype).itemsize
    cost = pl.CostEstimate(
        flops=rows * LANES,
        transcendentals=0,
        bytes_accessed=rows * LANES * itemsize
        + num_chunks * acc_rows * LANES * 4,
    )

    return pl.pallas_call(
        kernel,
        out_shape=jax.ShapeDtypeStruct((num_chunks * acc_rows, LANES),
                                       jnp.float32),
        grid_spec=pltpu.PrefetchScalarGridSpec(
            num_scalar_prefetch=0,
            grid=(num_chunks, tiles_per_chunk),
            in_specs=[pl.BlockSpec((row_tile, LANES), in_index_map,
                                   **in_kwargs)],
            out_specs=pl.BlockSpec((acc_rows, LANES), lambda c, i: (c, 0)),
        ),
        compiler_params=pltpu.CompilerParams(
            dimension_semantics=("parallel", "arbitrary"),
            vmem_limit_bytes=VMEM_LIMIT_BYTES,
        ),
        cost_estimate=cost,
    )(x2d)


def generator_loss(neg, weight=1.0):
    """Pallas equivalent of GeneratorLoss(weight)(neg) == -weight * mean(neg)."""
    neg = jnp.asarray(neg)
    n_elems = neg.size
    w = jnp.asarray(weight, jnp.float32)
    if n_elems == 0:
        # torch.mean of an empty tensor is NaN.
        return -w * jnp.float32(jnp.nan)

    flat = jnp.ravel(neg)                      # metadata-only, original dtype
    full_rows = n_elems // LANES
    rem = n_elems - full_rows * LANES

    # Ragged tail (< 128 elements): tiny jnp reduce in the wrapper instead of
    # a full-array pad copy + in-kernel lane masking.
    tail_sum = jnp.float32(0.0)
    if rem:
        tail = lax.slice(flat, (full_rows * LANES,), (n_elems,))
        tail_sum = jnp.sum(tail.astype(jnp.float32))

    main_sum = jnp.float32(0.0)
    if full_rows > 0:
        main = flat if rem == 0 else lax.slice(flat, (0,), (full_rows * LANES,))
        # TODO(synk): for large ragged inputs the prefix slice still costs one
        # HBM copy; a manual-DMA kernel over the raw 1-D array would avoid it.
        x2d = main.reshape(full_rows, LANES)   # lane-dense slab, original dtype

        itemsize = jnp.dtype(x2d.dtype).itemsize
        max_rows = max(8, _round_up(TARGET_BLOCK_BYTES // (LANES * itemsize), 8))
        row_tile = max_rows if full_rows >= max_rows else _round_up(full_rows, 8)
        acc_rows = MAX_ACC_ROWS if row_tile % MAX_ACC_ROWS == 0 else 8

        total_tiles = pl.cdiv(full_rows, row_tile)
        num_chunks = _num_chunks()
        if total_tiles < num_chunks:
            num_chunks = 1

        partials = _partial_sums(x2d, row_tile=row_tile, acc_rows=acc_rows,
                                 num_chunks=num_chunks)
        main_sum = jnp.sum(partials)           # tiny final reduce in XLA

    total = main_sum + tail_sum
    return (-w) * total / jnp.float32(n_elems)


if __name__ == "__main__":
    key = jax.random.PRNGKey(0)
    k1, k2 = jax.random.split(key)

    # Small NCHW-shaped "discriminator score on fake samples".
    neg = jax.random.normal(k1, (2, 4, 16, 16), dtype=jnp.float32)
    weight = 2.0
    loss = generator_loss(neg, weight=weight)
    jax.block_until_ready(loss)
    ref = -weight * jnp.mean(neg)
    assert jnp.allclose(loss, ref, atol=1e-5, rtol=1e-5), (loss, ref)

    # Larger ragged input: exercises the multi-tile streaming path, the masked
    # boundary tile, chunk overrun skipping and the wrapper-side tail reduce.
    neg2 = jax.random.normal(k2, (1153, 999), dtype=jnp.float32)
    loss2 = generator_loss(neg2, weight=1.0)
    jax.block_until_ready(loss2)
    ref2 = -1.0 * jnp.mean(neg2)
    assert jnp.allclose(loss2, ref2, atol=1e-5, rtol=1e-4), (loss2, ref2)

    print("KERNEL_OK")
</pallas_src>

<mosaic_0001>
module attributes {stable_mosaic.version = 11 : i64} {
  func.func @_partial_sum_kernel(%arg0: i32, %arg1: i32, %arg2: memref<16x128xf32, #tpu.memory_space<vmem>>, %arg3: memref<8x128xf32, #tpu.memory_space<vmem>>) attributes {dimension_semantics = [#tpu.dimension_semantics<parallel>, #tpu.dimension_semantics<arbitrary>], iteration_bounds = array<i64: 1, 1>, scalar_prefetch = 0 : i64, scratch_operands = 0 : i64, tpu.core_type = #tpu.core_type<tc>, window_params = [{transform_indices = @transform_0, window_bounds = array<i64: 16, 128>}, {transform_indices = @transform_1, window_bounds = array<i64: 8, 128>}]} {
    %c0_i32 = arith.constant 0 : i32
    %0 = arith.cmpi eq, %arg1, %c0_i32 : i32
    %1 = arith.extui %0 : i1 to i32
    %c0_i32_0 = arith.constant 0 : i32
    %2 = arith.cmpi ne, %1, %c0_i32_0 : i32
    scf.if %2 {
      %cst_6 = arith.constant 0.000000e+00 : f32
      %9 = vector.broadcast %cst_6 : f32 to vector<8x128xf32>
      %c0_7 = arith.constant 0 : index
      %c0_8 = arith.constant 0 : index
      %10 = vector.load %arg3[%c0_7, %c0_8] : memref<8x128xf32, #tpu.memory_space<vmem>>, vector<8x128xf32>
      tpu.vector_store %arg3[%c0_7, %c0_8], %9 {strides = array<i32>} : memref<8x128xf32, #tpu.memory_space<vmem>>, vector<8x128xf32>,
    } else {
    }
    %c0 = arith.constant 0 : index
    %c0_1 = arith.constant 0 : index
    %3 = vector.load %arg2[%c0, %c0_1] : memref<16x128xf32, #tpu.memory_space<vmem>>, vector<16x128xf32>
    %c0_2 = arith.constant 0 : index
    %c0_3 = arith.constant 0 : index
    %4 = vector.load %arg3[%c0_2, %c0_3] : memref<8x128xf32, #tpu.memory_space<vmem>>, vector<8x128xf32>
    %5 = vector.shape_cast %3 : vector<16x128xf32> to vector<2x8x128xf32>
    %cst = arith.constant dense<0.000000e+00> : vector<8x128xf32>
    %6 = vector.multi_reduction <add>, %5, %cst [0] : vector<2x8x128xf32> to vector<8x128xf32>
    %7 = arith.addf %4, %6 : vector<8x128xf32>
    %c0_4 = arith.constant 0 : index
    %c0_5 = arith.constant 0 : index
    %8 = vector.load %arg3[%c0_4, %c0_5] : memref<8x128xf32, #tpu.memory_space<vmem>>, vector<8x128xf32>
    tpu.vector_store %arg3[%c0_4, %c0_5], %7 {strides = array<i32>} : memref<8x128xf32, #tpu.memory_space<vmem>>, vector<8x128xf32>,
    return
  }
  func.func @transform_0(%arg0: i32, %arg1: i32) -> (i32, i32) {
    %c1_i32 = arith.constant 1 : i32
    %0 = arith.muli %arg0, %c1_i32 : i32
    %1 = arith.addi %0, %arg1 : i32
    %c0_i32 = arith.constant 0 : i32
    %2 = arith.minsi %1, %c0_i32 : i32
    %c0_i32_0 = arith.constant 0 : i32
    %c0_i32_1 = arith.constant 0 : i32
    return %2, %c0_i32_0 : i32, i32
  }
  func.func @transform_1(%arg0: i32, %arg1: i32) -> (i32, i32) {
    %c0_i32 = arith.constant 0 : i32
    %c0_i32_0 = arith.constant 0 : i32
    return %arg0, %c0_i32 : i32, i32
  }
}

</mosaic_0001>

<llo_original>
// kernel: tpu_custom_call.1
$region0: #{tpu_custom_call.1}
  #allocation0 [shape = 'u32[]', space=smem, size = 0x4, offset = 0x4, fixed_abs, tag = 'smem constant byte address 0x4 - core index']
  #allocation1 [shape = 'u32[144,128]{1,0:T(1,128)}', space=vmem, size = 0x12000, scoped, tag = 'internal scratch']
  %s0 = inlined_call_operand.hbm [shape: f32[16,128], index: 0, kind: input, shape index: {}]
  %s1 = inlined_call_operand.hbm [shape: f32[8,128], index: 1, kind: output, shape index: {}]
  %s2 = sld [smem:[#allocation0]]
  $region22: #{tpu_custom_call.1} parent=0
    _
  %s4 = ssub.s32 1, %s2
  %s5 = scalar_select 0, %s4, %s2
  $region1: #{tpu_custom_call.1} parent=0
    #allocation2 [shape = 'u8[8192]{0}', space=vmem, size = 0x2000, scoped, tag = 'input window, operand 0, single buffered']
    #allocation3 [shape = 's32[1]{0}', space=sflag, size = 0x4, scoped, tag = 'scoped memory for tpu_custom_call.1']
    #allocation4 [shape = 's32[1]{0}', space=sflag, size = 0x4, scoped, tag = 'scoped memory for tpu_custom_call.1']
    #allocation5 [shape = 'u8[4096]{0}', space=vmem, size = 0x1000, scoped, tag = 'output window, operand 0, single buffered']
    %6 = vsyncpa [#allocation3], 0
    %7 = vsyncpa [#allocation4], 0
    // Predicated region
    $region2: #{tpu_custom_call.1} parent=1 // pred_check
      _
    $region3: #{tpu_custom_call.1} parent=1 // pred_check_branch
      %9 = sbr.rel (0) target = $region5
    $region4: #{tpu_custom_call.1} parent=1 // pred_region
      %s10 = sadd.s32 0, 0
      %p11 = scmp.lt.s32.totalorder %s10, 0
      %s12 = scalar_select %p11, %s10, 0
      %s13 = smul.u32 2, %s12
      %s15 = ssub.s32 256, 256
      %16 = vsyncadd [#allocation3], %s15
      %s17 = smul.addr %s13, 128
      %s18 = scalar_lea.hbm %s0, %s17
      %s19 = sshll.u32 [#allocation2], 4
      %s20 = int_to_ptr.vmem [resolvable:$true] %s19
      %25 = dma.hbm_to_vmem [thread:$0]  %s18, 256, %s20, [#allocation3], 128, 128, 8
    $region5: #{tpu_custom_call.1} parent=1 // pred_fallthru
      _
    // Predicated region
    $region6: #{tpu_custom_call.1} parent=1 // pred_check
      _
    $region7: #{tpu_custom_call.1} parent=1 // pred_check_branch
      %27 = sbr.rel (0) target = $region9
    $region8: #{tpu_custom_call.1} parent=1 // pred_region
      %28 = dma.done [#allocation3], 256
    $region9: #{tpu_custom_call.1} parent=1 // pred_fallthru
      _
    %s29 = sadd.s32 0, 0
    %p30 = scmp.lt.s32.totalorder %s29, 0
    %s31 = scalar_select %p30, %s29, 0
    %s32 = smul.u32 2, %s31
    %p33 = scmp.eq.s32.totalorder 0, 0
    // Predicated region
    $region10: #{tpu_custom_call.1} parent=1 // pred_check
      %p34 = pneg %p33
    $region11: #{tpu_custom_call.1} parent=1 // pred_check_branch
      %36 = sbr.rel (%p34) target = $region13
    $region12: #{tpu_custom_call.1} parent=1 // pred_region
      %37 = vst [vmem:[#allocation5] sm:$0xff] 0.0
    $region13: #{tpu_custom_call.1} parent=1 // pred_fallthru
      _
    %v38 = vld [vmem:[#allocation2] sm:$0xff]
    %v39 = vld [vmem:[#allocation2 + $0x8] sm:$0xff]
    %v40 = vld [vmem:[#allocation5] sm:$0xff]
    %v41 = vadd.f32 %v38, %v39
    %v42 = vadd.f32 %v40, %v41
    %43 = vst [vmem:[#allocation5] sm:$0xff] %v42
    // Predicated region
    $region14: #{tpu_custom_call.1} parent=1 // pred_check
      _
    $region15: #{tpu_custom_call.1} parent=1 // pred_check_branch
      %45 = sbr.rel (0) target = $region17
    $region16: #{tpu_custom_call.1} parent=1 // pred_region
      %s47 = ssub.s32 128, 128
      %48 = vsyncadd [#allocation4], %s47
      %s50 = sshll.u32 [#allocation5], 4
      %s51 = int_to_ptr.vmem [resolvable:$true] %s50
      %53 = dma.vmem_to_hbm [thread:$0]  %s51, 128, %s1, [#allocation4]
    $region17: #{tpu_custom_call.1} parent=1 // pred_fallthru
      _
    // Predicated region
    $region18: #{tpu_custom_call.1} parent=1 // pred_check
      _
    $region19: #{tpu_custom_call.1} parent=1 // pred_check_branch
      %55 = sbr.rel (0) target = $region21
    $region20: #{tpu_custom_call.1} parent=1 // pred_region
      %56 = dma.done [#allocation4], 128
    $region21: #{tpu_custom_call.1} parent=1 // pred_fallthru
      _
    %57 = vsyncpa [#allocation3], 1
    %58 = vsyncpa [#allocation4], 1

</llo_original>
